<compile_context>
chip_gen: v7x
topology: tpu7x:2x2x1
jax: 0.10.0
libtpu: 0.0.40
codegen_flags: <defaults>
</compile_context>

<pallas_src>
import functools

import jax
import jax.numpy as jnp
from jax.experimental import pallas as pl
from jax.experimental.pallas import tpu as pltpu


def _round_up(n, m):
    return ((n + m - 1) // m) * m


def _make_fused_kernel(out1, out2):
    """Kernel: one MXU pass producing both sub-module outputs for a batch tile.

    x_ref: (TB, D)           input rows
    w_ref: (D, out1+out2)    [W1.T | W2.T] fused weight slab (resident)
    b_ref: (1, out1+out2)    [b1   | b2  ] fused bias row    (resident)
    o1_ref: (TB, out1)       module-one output tile
    o2_ref: (TB, out2)       module-two output tile
    """

    def kernel(x_ref, w_ref, b_ref, o1_ref, o2_ref):
        acc = jnp.dot(x_ref[...], w_ref[...], preferred_element_type=jnp.float32)
        y = acc + b_ref[...]
        o1_ref[...] = y[:, :out1].astype(o1_ref.dtype)
        o2_ref[...] = y[:, out1:out1 + out2].astype(o2_ref.dtype)

    return kernel


def fuse_concat_linear_params(w1, b1, w2, b2, dtype=jnp.float32):
    """One-time parameter prep (do NOT call per-forward).

    Takes PyTorch-convention Linear params (w: (out, D), b: (out,)) for the two
    sub-modules and returns the fused (D, out1+out2) weight slab and
    (1, out1+out2) bias row plus the true output widths.
    """
    out1, d1 = w1.shape
    out2, d2 = w2.shape
    assert d1 == d2, "both sub-modules must consume the same input features"
    w_fused = jnp.concatenate(
        [w1.T.astype(dtype), w2.T.astype(dtype)], axis=1)          # (D, out1+out2)
    b_fused = jnp.concatenate(
        [b1.astype(dtype), b2.astype(dtype)])[None, :]              # (1, out1+out2)
    return w_fused, b_fused, out1, out2


@functools.partial(
    jax.jit, static_argnames=("out1", "out2", "tile_b", "min_pallas_batch"))
def concat_module_forward(x, w_fused, b_fused, *, out1, out2,
                          tile_b=4096, min_pallas_batch=512):
    """Pallas implementation of ConcatModule([Linear, Linear]).forward.

    Args:
      x:        (B, D) input.
      w_fused:  (D, out1+out2) fused weight from fuse_concat_linear_params.
      b_fused:  (1, out1+out2) fused bias from fuse_concat_linear_params.
      out1/out2: true output widths of the two sub-modules.
      tile_b:   max batch-tile rows (multiple of 8).
      min_pallas_batch: below this batch size, use a plain XLA dot (a 1-step
        Pallas grid is pure launch/DMA-setup overhead).  Set to 0 to force the
        Pallas path.
    Returns:
      [y1, y2] with y1: (B, out1), y2: (B, out2) — same list semantics as the
      PyTorch module.
    """
    B, D = x.shape
    out_total = out1 + out2
    assert w_fused.shape == (D, out_total)

    # Tiny batches: XLA's fused dot beats a single-step Pallas grid.
    if B < min_pallas_batch:
        y = jnp.dot(x, w_fused, preferred_element_type=jnp.float32) + b_fused
        y = y.astype(x.dtype)
        return [y[:, :out1], y[:, out1:out_total]]

    # Batch tiling: multiple of 8 sublanes, capped at tile_b rows per grid step.
    tb = min(tile_b, _round_up(B, 8))
    # Prefer >=2 grid steps so dimension_semantics=("parallel",) can actually
    # shard the batch across TensorCores (v7x megacore).
    if B > 16 and pl.cdiv(B, tb) < 2:
        tb = _round_up(pl.cdiv(B, 2), 8)
    grid = (pl.cdiv(B, tb),)   # ragged edge block handled by Pallas (no jnp.pad)

    y1, y2 = pl.pallas_call(
        _make_fused_kernel(out1, out2),
        out_shape=(
            jax.ShapeDtypeStruct((B, out1), x.dtype),
            jax.ShapeDtypeStruct((B, out2), x.dtype),
        ),
        grid=grid,
        in_specs=[
            pl.BlockSpec((tb, D), lambda i: (i, 0)),          # x batch tile
            pl.BlockSpec((D, out_total), lambda i: (0, 0)),   # fused weight (resident)
            pl.BlockSpec((1, out_total), lambda i: (0, 0)),   # fused bias (resident)
        ],
        out_specs=(
            pl.BlockSpec((tb, out1), lambda i: (i, 0)),
            pl.BlockSpec((tb, out2), lambda i: (i, 0)),
        ),
        compiler_params=pltpu.CompilerParams(
            dimension_semantics=("parallel",),   # megacore-shard the batch grid
        ),
    )(x, w_fused, b_fused)

    return [y1, y2]


if __name__ == "__main__":
    key = jax.random.PRNGKey(0)
    k_x, k_w1, k_b1, k_w2, k_b2 = jax.random.split(key, 5)

    B, D = 8, 32          # batch, hidden
    OUT1, OUT2 = 16, 24   # output dims of the two sub-modules

    x = jax.random.normal(k_x, (B, D), dtype=jnp.float32)
    # PyTorch Linear shapes: weight (out, in), bias (out,)
    w1 = jax.random.normal(k_w1, (OUT1, D), dtype=jnp.float32) * 0.05
    b1 = jax.random.normal(k_b1, (OUT1,), dtype=jnp.float32) * 0.05
    w2 = jax.random.normal(k_w2, (OUT2, D), dtype=jnp.float32) * 0.05
    b2 = jax.random.normal(k_b2, (OUT2,), dtype=jnp.float32) * 0.05

    # One-time parameter fusion (hoisted out of the per-call path).
    w_fused, b_fused, out1, out2 = fuse_concat_linear_params(w1, b1, w2, b2)

    # Force the Pallas path (min_pallas_batch=0) so the kernel itself runs and
    # is checked even at this small demo batch.
    outputs = concat_module_forward(
        x, w_fused, b_fused, out1=out1, out2=out2, min_pallas_batch=0)
    for o in outputs:
        jax.block_until_ready(o)

    # Reference check in plain JAX (same math as the two nn.Linear modules).
    ref1 = x @ w1.T + b1
    ref2 = x @ w2.T + b2
    assert outputs[0].shape == ref1.shape and outputs[1].shape == ref2.shape
    assert jnp.allclose(outputs[0], ref1, atol=1e-5, rtol=1e-5)
    assert jnp.allclose(outputs[1], ref2, atol=1e-5, rtol=1e-5)

    # Also exercise the small-batch fallback dispatch path (plain XLA dot).
    fb = concat_module_forward(x, w_fused, b_fused, out1=out1, out2=out2)
    assert jnp.allclose(fb[0], ref1, atol=1e-5, rtol=1e-5)
    assert jnp.allclose(fb[1], ref2, atol=1e-5, rtol=1e-5)

    print("KERNEL_OK")
</pallas_src>

<mosaic_0001>
module attributes {stable_mosaic.version = 11 : i64} {
  func.func @kernel(%arg0: i32, %arg1: memref<8x32xf32, #tpu.memory_space<vmem>>, %arg2: memref<32x40xf32, #tpu.memory_space<vmem>>, %arg3: memref<1x40xf32, #tpu.memory_space<vmem>>, %arg4: memref<8x16xf32, #tpu.memory_space<vmem>>, %arg5: memref<8x24xf32, #tpu.memory_space<vmem>>) attributes {dimension_semantics = [#tpu.dimension_semantics<parallel>], iteration_bounds = array<i64: 1>, scalar_prefetch = 0 : i64, scratch_operands = 0 : i64, tpu.core_type = #tpu.core_type<tc>, window_params = [{transform_indices = @transform_0, window_bounds = array<i64: 8, 32>}, {pipeline_mode = #tpu.pipeline_mode<synchronous>, transform_indices = @transform_1, window_bounds = array<i64: 32, 40>}, {pipeline_mode = #tpu.pipeline_mode<synchronous>, transform_indices = @transform_2, window_bounds = array<i64: 1, 40>}, {transform_indices = @transform_3, window_bounds = array<i64: 8, 16>}, {transform_indices = @transform_4, window_bounds = array<i64: 8, 24>}]} {
    %c0 = arith.constant 0 : index
    %c0_0 = arith.constant 0 : index
    %0 = vector.load %arg1[%c0, %c0_0] : memref<8x32xf32, #tpu.memory_space<vmem>>, vector<8x32xf32>
    %c0_1 = arith.constant 0 : index
    %c0_2 = arith.constant 0 : index
    %1 = vector.load %arg2[%c0_1, %c0_2] : memref<32x40xf32, #tpu.memory_space<vmem>>, vector<32x40xf32>
    %cst = arith.constant dense<0.000000e+00> : vector<8x40xf32>
    %2 = tpu.matmul %0, %1, %cst {dimension_numbers = #tpu.dot_dimension_numbers<[1], [0], [0], [1], [0, 0, 1, 1], [], []>} : vector<8x32xf32>, vector<32x40xf32>, vector<8x40xf32> -> vector<8x40xf32>
    %c0_3 = arith.constant 0 : index
    %c0_4 = arith.constant 0 : index
    %3 = vector.load %arg3[%c0_3, %c0_4] : memref<1x40xf32, #tpu.memory_space<vmem>>, vector<1x40xf32>
    %4 = vector.broadcast %3 : vector<1x40xf32> to vector<8x40xf32>
    %5 = arith.addf %2, %4 : vector<8x40xf32>
    %6 = vector.extract_strided_slice %5 {offsets = [0, 0], sizes = [8, 16], strides = [1, 1]} : vector<8x40xf32> to vector<8x16xf32>
    %c0_5 = arith.constant 0 : index
    %c0_6 = arith.constant 0 : index
    %7 = vector.load %arg4[%c0_5, %c0_6] : memref<8x16xf32, #tpu.memory_space<vmem>>, vector<8x16xf32>
    tpu.vector_store %arg4[%c0_5, %c0_6], %6 {strides = array<i32>} : memref<8x16xf32, #tpu.memory_space<vmem>>, vector<8x16xf32>,
    %8 = vector.extract_strided_slice %5 {offsets = [0, 16], sizes = [8, 24], strides = [1, 1]} : vector<8x40xf32> to vector<8x24xf32>
    %c0_7 = arith.constant 0 : index
    %c0_8 = arith.constant 0 : index
    %9 = vector.load %arg5[%c0_7, %c0_8] : memref<8x24xf32, #tpu.memory_space<vmem>>, vector<8x24xf32>
    tpu.vector_store %arg5[%c0_7, %c0_8], %8 {strides = array<i32>} : memref<8x24xf32, #tpu.memory_space<vmem>>, vector<8x24xf32>,
    return
  }
  func.func @transform_0(%arg0: i32) -> (i32, i32) {
    %c0_i32 = arith.constant 0 : i32
    %c0_i32_0 = arith.constant 0 : i32
    return %arg0, %c0_i32 : i32, i32
  }
  func.func @transform_1(%arg0: i32) -> (i32, i32) {
    %c0_i32 = arith.constant 0 : i32
    %c0_i32_0 = arith.constant 0 : i32
    %c0_i32_1 = arith.constant 0 : i32
    return %c0_i32, %c0_i32_0 : i32, i32
  }
  func.func @transform_2(%arg0: i32) -> (i32, i32) {
    %c0_i32 = arith.constant 0 : i32
    %c0_i32_0 = arith.constant 0 : i32
    %c0_i32_1 = arith.constant 0 : i32
    return %c0_i32, %c0_i32_0 : i32, i32
  }
  func.func @transform_3(%arg0: i32) -> (i32, i32) {
    %c0_i32 = arith.constant 0 : i32
    %c0_i32_0 = arith.constant 0 : i32
    return %arg0, %c0_i32 : i32, i32
  }
  func.func @transform_4(%arg0: i32) -> (i32, i32) {
    %c0_i32 = arith.constant 0 : i32
    %c0_i32_0 = arith.constant 0 : i32
    return %arg0, %c0_i32 : i32, i32
  }
}

</mosaic_0001>

<llo_original>
// kernel: concat_module_forward.1
$region0: #{concat_module_forward.1}
  #allocation0 [shape = 'u32[]', space=smem, size = 0x4, offset = 0x4, fixed_abs, tag = 'smem constant byte address 0x4 - core index']
  #allocation1 [shape = 'u32[144,128]{1,0:T(1,128)}', space=vmem, size = 0x12000, scoped, tag = 'internal scratch']
  %s0 = inlined_call_operand.hbm [shape: f32[8,32], index: 0, kind: input, shape index: {}]
  %s1 = inlined_call_operand.hbm [shape: f32[32,40], index: 1, kind: input, shape index: {}]
  %s2 = inlined_call_operand.vmem [shape: f32[1,40], index: 2, kind: input, shape index: {}]
  %s3 = inlined_call_operand.hbm [shape: f32[8,16], index: 3, kind: output, shape index: {0}]
  %s4 = inlined_call_operand.hbm [shape: f32[8,24], index: 4, kind: output, shape index: {1}]
  %5 = xla_tuple %s3, %s4
  %s6 = sld [smem:[#allocation0]]
  $region38: #{concat_module_forward.1} parent=0
    _
  %s8 = ssub.s32 1, %s6
  %s9 = scalar_select 0, %s8, %s6
  $region1: #{concat_module_forward.1} parent=0
    #allocation2 [shape = 'u8[4096]{0}', space=vmem, size = 0x1000, scoped, tag = 'input window, operand 0, single buffered']
    #allocation3 [shape = 's32[1]{0}', space=sflag, size = 0x4, scoped, tag = 'scoped memory for concat_module_forward.1']
    #allocation4 [shape = 's32[1]{0}', space=sflag, size = 0x4, scoped, tag = 'scoped memory for concat_module_forward.1']
    #allocation5 [shape = 'u8[16384]{0}', space=vmem, size = 0x4000, scoped, tag = 'input window, operand 1, single buffered']
    #allocation6 [shape = 's32[1]{0}', space=sflag, size = 0x4, scoped, tag = 'scoped memory for concat_module_forward.1']
    #allocation7 [shape = 'u8[4096]{0}', space=vmem, size = 0x1000, scoped, tag = 'output window, operand 0, single buffered']
    #allocation8 [shape = 'u8[4096]{0}', space=vmem, size = 0x1000, scoped, tag = 'output window, operand 1, single buffered']
    #allocation9 [shape = 's32[1]{0}', space=sflag, size = 0x4, scoped, tag = 'scoped memory for concat_module_forward.1']
    %10 = vsyncpa [#allocation3], 0
    %11 = vsyncpa [#allocation6], 0
    %12 = vsyncpa [#allocation4], 0
    %13 = vsyncpa [#allocation9], 0
    // Predicated region
    $region2: #{concat_module_forward.1} parent=1 // pred_check
      _
    $region3: #{concat_module_forward.1} parent=1 // pred_check_branch
      %15 = sbr.rel (0) target = $region5
    $region4: #{concat_module_forward.1} parent=1 // pred_region
      %s17 = ssub.s32 128, 128
      %18 = vsyncadd [#allocation3], %s17
      %s20 = sshll.u32 [#allocation2], 4
      %s21 = int_to_ptr.vmem [resolvable:$true] %s20
      %23 = dma.hbm_to_vmem [thread:$0]  %s0, 128, %s21, [#allocation3]
    $region5: #{concat_module_forward.1} parent=1 // pred_fallthru
      _
    // Predicated region
    $region6: #{concat_module_forward.1} parent=1 // pred_check
      _
    $region7: #{concat_module_forward.1} parent=1 // pred_check_branch
      %25 = sbr.rel (0) target = $region9
    $region8: #{concat_module_forward.1} parent=1 // pred_region
      %s27 = ssub.s32 512, 512
      %28 = vsyncadd [#allocation6], %s27
      %s29 = sshll.u32 [#allocation5], 4
      %s30 = int_to_ptr.vmem [resolvable:$true] %s29
      %35 = dma.hbm_to_vmem [thread:$0]  %s1, 512, %s30, [#allocation6], 128, 128, 8
    $region9: #{concat_module_forward.1} parent=1 // pred_fallthru
      _
    // Predicated region
    $region10: #{concat_module_forward.1} parent=1 // pred_check
      _
    $region11: #{concat_module_forward.1} parent=1 // pred_check_branch
      %37 = sbr.rel (0) target = $region13
    $region12: #{concat_module_forward.1} parent=1 // pred_region
      _
    $region13: #{concat_module_forward.1} parent=1 // pred_fallthru
      _
    // Predicated region
    $region14: #{concat_module_forward.1} parent=1 // pred_check
      _
    $region15: #{concat_module_forward.1} parent=1 // pred_check_branch
      %39 = sbr.rel (0) target = $region17
    $region16: #{concat_module_forward.1} parent=1 // pred_region
      %40 = dma.done [#allocation3], 128
    $region17: #{concat_module_forward.1} parent=1 // pred_fallthru
      _
    // Predicated region
    $region18: #{concat_module_forward.1} parent=1 // pred_check
      _
    $region19: #{concat_module_forward.1} parent=1 // pred_check_branch
      %42 = sbr.rel (0) target = $region21
    $region20: #{concat_module_forward.1} parent=1 // pred_region
      %43 = dma.done [#allocation6], 512
    $region21: #{concat_module_forward.1} parent=1 // pred_fallthru
      _
    %v44 = vld [vmem:[#allocation2] sm:$0xff]
    %v45 = vld [vmem:[#allocation5] sm:$0xff]
    %v46 = vld [vmem:[#allocation5 + $0x8] sm:$0xff]
    %v47 = vld [vmem:[#allocation5 + $0x10] sm:$0xff]
    %v48 = vld [vmem:[#allocation5 + $0x18] sm:$0xff]
    %v49 = vld [vmem:[%s2] sm:$0x1]
    %v51 = vlaneseq
    %v52 = vshrl.u32 %v51, 7
    %v53 = vsub.s32 0, %v52
    %v54 = vrot.slane %v49, %v53
    %vm56 = vcmask 261120
    %v58 = vsel %vm56, %v44, 0
    %60 = vmatprep.subr.mxu0 0.0
    %61 = vmatpush1.msra.mxu0 %v45
    %62 = vmatprep.subr.mxu0 0.0
    %63 = vmatpush1.msra.mxu0 %v46
    %64 = vmatprep.subr.mxu0 0.0
    %65 = vmatpush1.msra.mxu0 %v47
    %66 = vmatprep.subr.mxu0 0.0
    %67 = vmatpush1.msra.mxu0 %v48
    %68 = vmatprep.subr.mxu0 0.0
    %69 = vmatpush1.msra.mxu0 0.0
    %70 = vmatprep.subr.mxu0 0.0
    %71 = vmatpush1.msra.mxu0 0.0
    %72 = vmatprep.subr.mxu0 0.0
    %73 = vmatpush1.msra.mxu0 0.0
    %74 = vmatprep.subr.mxu0 0.0
    %75 = vmatpush1.msra.mxu0 0.0
    %76 = vmatprep.subr.mxu0 0.0
    %77 = vmatpush1.msra.mxu0 0.0
    %78 = vmatprep.subr.mxu0 0.0
    %79 = vmatpush1.msra.mxu0 0.0
    %80 = vmatprep.subr.mxu0 0.0
    %81 = vmatpush1.msra.mxu0 0.0
    %82 = vmatprep.subr.mxu0 0.0
    %83 = vmatpush1.msra.mxu0 0.0
    %84 = vmatprep.subr.mxu0 0.0
    %85 = vmatpush1.msra.mxu0 0.0
    %86 = vmatprep.subr.mxu0 0.0
    %87 = vmatpush1.msra.mxu0 0.0
    %88 = vmatprep.subr.mxu0 0.0
    %89 = vmatpush1.msra.mxu0 0.0
    %90 = vmatprep.subr.mxu0 0.0
    %91 = vmatpush1.msra.mxu0 0.0
    %92 = vmatprep.subr.mxu0 0.0
    %93 = vmatpush1.msra.mxu0 0.0
    %94 = vmatprep.subr.mxu0 0.0
    %95 = vmatpush1.msra.mxu0 0.0
    %96 = vmatprep.subr.mxu0 0.0
    %97 = vmatpush1.msra.mxu0 0.0
    %98 = vmatprep.subr.mxu0 0.0
    %99 = vmatpush1.msra.mxu0 0.0
    %100 = vmatprep.subr.mxu0 0.0
    %101 = vmatpush1.msra.mxu0 0.0
    %102 = vmatprep.subr.mxu0 0.0
    %103 = vmatpush1.msra.mxu0 0.0
    %104 = vmatprep.subr.mxu0 0.0
    %105 = vmatpush1.msra.mxu0 0.0
    %106 = vmatprep.subr.mxu0 0.0
    %107 = vmatpush1.msra.mxu0 0.0
    %108 = vmatprep.subr.mxu0 0.0
    %109 = vmatpush1.msra.mxu0 0.0
    %110 = vmatprep.subr.mxu0 0.0
    %111 = vmatpush1.msra.mxu0 0.0
    %112 = vmatprep.subr.mxu0 0.0
    %113 = vmatpush1.msra.mxu0 0.0
    %114 = vmatprep.subr.mxu0 0.0
    %115 = vmatpush1.msra.mxu0 0.0
    %116 = vmatprep.subr.mxu0 0.0
    %117 = vmatpush1.msra.mxu0 0.0
    %118 = vmatprep.subr.mxu0 0.0
    %119 = vmatpush1.msra.mxu0 0.0
    %120 = vmatprep.subr.mxu0 0.0
    %121 = vmatpush1.msra.mxu0 0.0
    %122 = vmatprep.subr.mxu0 0.0
    %123 = vmatpush1.msra.mxu0 0.0
    %124 = vmatprep.mubr.f32.mxu0 0.0
    %125 = vmatmul.mubr.f32.gmra.mrb[0].mxu0 %v58
    %v126 = vpop.f32.mrb[0].mxu0
    %v127 = vadd.f32 %v54, %v126
    %v128 = vpop.f32.mrb[0].mxu0
    %129 = vdwg.mxu0
    %vm130 = vcmask 130048
    %131 = vst.msk [vmem:[#allocation7] sm:$0xff] %vm130, %v127
    %133 = vrot.lane.b32.xlu0 %v127, 112
    %v134 = vpop.permute.xlu0 %133
    %vm136 = vcmask 195584
    %137 = vst.msk [vmem:[#allocation8] sm:$0xff] %vm136, %v134
    // Predicated region
    $region22: #{concat_module_forward.1} parent=1 // pred_check
      _
    $region23: #{concat_module_forward.1} parent=1 // pred_check_branch
      %139 = sbr.rel (0) target = $region25
    $region24: #{concat_module_forward.1} parent=1 // pred_region
      %s141 = ssub.s32 128, 128
      %142 = vsyncadd [#allocation4], %s141
      %s144 = sshll.u32 [#allocation7], 4
      %s145 = int_to_ptr.vmem [resolvable:$true] %s144
      %147 = dma.vmem_to_hbm [thread:$0]  %s145, 128, %s3, [#allocation4]
    $region25: #{concat_module_forward.1} parent=1 // pred_fallthru
      _
    // Predicated region
    $region26: #{concat_module_forward.1} parent=1 // pred_check
      _
    $region27: #{concat_module_forward.1} parent=1 // pred_check_branch
      %149 = sbr.rel (0) target = $region29
    $region28: #{concat_module_forward.1} parent=1 // pred_region
      %s151 = ssub.s32 128, 128
      %152 = vsyncadd [#allocation9], %s151
      %s154 = sshll.u32 [#allocation8], 4
      %s155 = int_to_ptr.vmem [resolvable:$true] %s154
      %157 = dma.vmem_to_hbm [thread:$0]  %s155, 128, %s4, [#allocation9]
    $region29: #{concat_module_forward.1} parent=1 // pred_fallthru
      _
    // Predicated region
    $region30: #{concat_module_forward.1} parent=1 // pred_check
      _
    $region31: #{concat_module_forward.1} parent=1 // pred_check_branch
      %159 = sbr.rel (0) target = $region33
    $region32: #{concat_module_forward.1} parent=1 // pred_region
      %160 = dma.done [#allocation4], 128
    $region33: #{concat_module_forward.1} parent=1 // pred_fallthru
      _
    // Predicated region
    $region34: #{concat_module_forward.1} parent=1 // pred_check
      _
    $region35: #{concat_module_forward.1} parent=1 // pred_check_branch
      %162 = sbr.rel (0) target = $region37
    $region36: #{concat_module_forward.1} parent=1 // pred_region
      %163 = dma.done [#allocation9], 128
    $region37: #{concat_module_forward.1} parent=1 // pred_fallthru
      _
    %164 = vsyncpa [#allocation3], 1
    %165 = vsyncpa [#allocation6], 1
    %166 = vsyncpa [#allocation4], 1
    %167 = vsyncpa [#allocation9], 1

</llo_original>
